<compile_context>
chip_gen: v6e
topology: v6e:2x2x1
jax: 0.10.0
libtpu: 0.0.40
codegen_flags: <defaults>
</compile_context>

<pallas_src>
import functools

import jax
import jax.numpy as jnp
import numpy as np
from jax.experimental import pallas as pl
from jax.experimental.pallas import tpu as pltpu


def _resblock_kernel(x_ref, w1_ref, s1_ref, b1_ref, w2_ref, s2_ref, b2_ref,
                     out_ref, xpad_ref, patch_ref, *, W, padl):
    """One image per grid step, channel-major / spatial-on-lanes layout.

    x_ref:     (1, C, H*W) f32   input block (also the residual branch)
    w1_ref:    (C, 9*C)    bf16  conv1 weights, (cout) x (tap, cin) im2col layout
    s1_ref:    (C, 1)      f32   folded BN1 scale
    b1_ref:    (C, 1)      f32   folded BN1 shift (includes conv1 bias)
    w2_ref:    (C, 9*C)    bf16  conv2 weights
    s2_ref:    (C, 1)      f32
    b2_ref:    (C, 1)      f32
    out_ref:   (1, C, H*W)
    xpad_ref:  VMEM (C, padl + H*W + W + 1) f32  flat zero-padded staging rows
    patch_ref: VMEM (9*C, H*W) bf16              im2col patch matrix (reused)
    """
    _, C, HW = out_ref.shape

    # Column index of every flat spatial position; used to zero the taps that
    # would otherwise read across a row boundary (left/right conv border).
    col = jax.lax.broadcasted_iota(jnp.int32, (C, HW), 1) % W
    not_left = col != 0
    not_right = col != W - 1

    # Zero the whole staging buffer once per step (a few KB, lane-aligned
    # stores); both convs then overwrite only the interior, borders stay zero.
    # Per-step zeroing keeps this correct under any grid scheduling.
    xpad_ref[...] = jnp.zeros_like(xpad_ref)

    def conv3x3(img, w_ref):
        # img: (C, HW) f32 conv input; interior store is lane-aligned (padl is
        # a multiple of 128) and full-lane-width.
        xpad_ref[:, padl:padl + HW] = img
        # Build the (9*C, HW) patch matrix: rows [t*C:(t+1)*C] hold the image
        # shifted by tap t=(dy,dx), matching the (ky,kx,cin) weight flattening.
        # Each tap is a static lane-offset slice (vertical out-of-bounds taps
        # land in the zero padding) plus a column mask for the dx=+-1 border.
        t = 0
        for dy in (-1, 0, 1):
            for dx in (-1, 0, 1):
                start = padl + dy * W + dx
                tap = xpad_ref[:, start:start + HW]
                if dx == -1:
                    tap = jnp.where(not_left, tap, 0.0)
                elif dx == 1:
                    tap = jnp.where(not_right, tap, 0.0)
                patch_ref[t * C:(t + 1) * C, :] = tap.astype(jnp.bfloat16)
                t += 1
        # One MXU matmul, K = 9*C, N = H*W (lane-dense); f32 accumulation.
        return jnp.dot(w_ref[...], patch_ref[...],
                       preferred_element_type=jnp.float32)

    x = x_ref[0].astype(jnp.float32)                     # (C, HW)

    # ---- conv1 + folded BN1 + ReLU ----
    h1 = jnp.maximum(conv3x3(x, w1_ref) * s1_ref[...] + b1_ref[...], 0.0)

    # ---- conv2 + folded BN2 ----
    h2 = conv3x3(h1, w2_ref) * s2_ref[...] + b2_ref[...]

    # ---- residual add + ReLU ----
    out = jnp.maximum(h2 + x, 0.0)
    out_ref[...] = out.reshape(out_ref.shape).astype(out_ref.dtype)


def residual_block_flat(x_flat, w1_t, s1, b1, w2_t, s2, b2, *, W):
    """x_flat: (N, C, H*W) channel-major, spatial flattened on the lane axis."""
    N, C, HW = x_flat.shape
    padl = ((W + 1 + 127) // 128) * 128       # lane-aligned interior offset

    kernel = functools.partial(_resblock_kernel, W=W, padl=padl)

    grid_spec = pltpu.PrefetchScalarGridSpec(
        num_scalar_prefetch=0,
        grid=(N,),                            # one image per step (N>=2 keeps
        in_specs=[                            # both v7x TensorCores busy)
            pl.BlockSpec((1, C, HW), lambda n: (n, 0, 0)),
            pl.BlockSpec((C, 9 * C), lambda n: (0, 0)),
            pl.BlockSpec((C, 1), lambda n: (0, 0)),
            pl.BlockSpec((C, 1), lambda n: (0, 0)),
            pl.BlockSpec((C, 9 * C), lambda n: (0, 0)),
            pl.BlockSpec((C, 1), lambda n: (0, 0)),
            pl.BlockSpec((C, 1), lambda n: (0, 0)),
        ],
        out_specs=pl.BlockSpec((1, C, HW), lambda n: (n, 0, 0)),
        scratch_shapes=[
            pltpu.VMEM((C, padl + HW + W + 1), jnp.float32),   # padded staging
            pltpu.VMEM((9 * C, HW), jnp.bfloat16),             # im2col patches
        ],
    )

    return pl.pallas_call(
        kernel,
        out_shape=jax.ShapeDtypeStruct((N, C, HW), x_flat.dtype),
        grid_spec=grid_spec,
        compiler_params=pltpu.CompilerParams(
            dimension_semantics=("parallel",)),
    )(x_flat, w1_t, s1, b1, w2_t, s2, b2)


def residual_block_nchw(x_nchw, params, eps=1e-5):
    """Public entry point matching the PyTorch module: NCHW in, NCHW out.

    params = (w1, cb1, g1, be1, rm1, rv1, w2, cb2, g2, be2, rm2, rv2)
      w*  : (3, 3, Cin, Cout) HWIO conv weights     cb* : conv bias (Cout,)
      g*/be* : BatchNorm weight / bias              rm*/rv* : running mean/var
    """
    (w1, cb1, g1, be1, rm1, rv1, w2, cb2, g2, be2, rm2, rv2) = params
    cin, cout = w1.shape[2], w1.shape[3]
    assert cin == cout, "identity residual requires in_channels == out_channels"
    assert w2.shape[2] == w2.shape[3] == cout

    def fold(g, be, rm, rv, cb):
        # BN(conv + cb) = conv * s + (cb - rm) * s + be,  s = g / sqrt(rv+eps)
        s = g / jnp.sqrt(rv + eps)
        b = be + (cb - rm) * s
        return (s.reshape(-1, 1).astype(jnp.float32),
                b.reshape(-1, 1).astype(jnp.float32))

    s1, b1 = fold(g1, be1, rm1, rv1, cb1)
    s2, b2 = fold(g2, be2, rm2, rv2, cb2)

    # (3,3,Cin,Cout) HWIO -> (Cout, 9*Cin) "(cout) x (tap, cin)" im2col layout,
    # fed to the MXU as bf16.
    w1_t = jnp.transpose(w1.reshape(9 * cin, cout)).astype(jnp.bfloat16)
    w2_t = jnp.transpose(w2.reshape(9 * cout, cout)).astype(jnp.bfloat16)

    N, C, H, W = x_nchw.shape
    x_flat = x_nchw.reshape(N, C, H * W)        # free reshape, no transpose
    y_flat = residual_block_flat(x_flat, w1_t, s1, b1, w2_t, s2, b2, W=W)
    return y_flat.reshape(N, C, H, W)


def _reference_nchw(x_nchw, params, eps=1e-5):
    """Pure-JAX reference (lax conv). Conv operands are bf16-rounded to mirror
    the kernel's deliberate bf16 MXU feed; accumulation and pointwise in f32."""
    (w1, cb1, g1, be1, rm1, rv1, w2, cb2, g2, be2, rm2, rv2) = params
    x = jnp.transpose(x_nchw, (0, 2, 3, 1))  # NHWC
    dn = ("NHWC", "HWIO", "NHWC")

    def conv_bn(h, w, cb, g, be, rm, rv, relu):
        y = jax.lax.conv_general_dilated(
            h.astype(jnp.bfloat16), w.astype(jnp.bfloat16), (1, 1), "SAME",
            dimension_numbers=dn, preferred_element_type=jnp.float32) + cb
        y = g * (y - rm) / jnp.sqrt(rv + eps) + be
        return jnp.maximum(y, 0.0) if relu else y

    out = conv_bn(x, w1, cb1, g1, be1, rm1, rv1, True)
    out = conv_bn(out, w2, cb2, g2, be2, rm2, rv2, False)
    out = jnp.maximum(out + x, 0.0)
    return jnp.transpose(out, (0, 3, 1, 2))


if __name__ == "__main__":
    # Small shapes: batch=2, in_channels=out_channels=4, spatial=16x16.
    N, C, Hs, Ws = 2, 4, 16, 16
    key = jax.random.PRNGKey(0)
    keys = jax.random.split(key, 9)

    x = jax.random.normal(keys[0], (N, C, Hs, Ws), jnp.float32)

    # Deterministic parameter init (HWIO conv weights).
    w1 = 0.1 * jax.random.normal(keys[1], (3, 3, C, C), jnp.float32)
    cb1 = 0.1 * jax.random.normal(keys[2], (C,), jnp.float32)
    g1 = 1.0 + 0.1 * jax.random.normal(keys[3], (C,), jnp.float32)
    be1 = 0.1 * jax.random.normal(keys[4], (C,), jnp.float32)
    w2 = 0.1 * jax.random.normal(keys[5], (3, 3, C, C), jnp.float32)
    cb2 = 0.1 * jax.random.normal(keys[6], (C,), jnp.float32)
    g2 = 1.0 + 0.1 * jax.random.normal(keys[7], (C,), jnp.float32)
    be2 = 0.1 * jax.random.normal(keys[8], (C,), jnp.float32)
    # Eval-mode running stats of a freshly initialized BatchNorm2d.
    rm = jnp.zeros((C,), jnp.float32)
    rv = jnp.ones((C,), jnp.float32)
    params = (w1, cb1, g1, be1, rm, rv, w2, cb2, g2, be2, rm, rv)

    y = jax.block_until_ready(residual_block_nchw(x, params))
    y_ref = jax.block_until_ready(_reference_nchw(x, params))
    np.testing.assert_allclose(np.asarray(y), np.asarray(y_ref),
                               rtol=1e-3, atol=1e-3)
    assert y.shape == (N, C, Hs, Ws)
    print("KERNEL_OK")
</pallas_src>

<mosaic_0001>
module attributes {stable_mosaic.version = 11 : i64} {
  func.func @_resblock_kernel(%arg0: i32, %arg1: memref<1x4x256xf32, #tpu.memory_space<vmem>>, %arg2: memref<4x36xbf16, #tpu.memory_space<vmem>>, %arg3: memref<4x1xf32, #tpu.memory_space<vmem>>, %arg4: memref<4x1xf32, #tpu.memory_space<vmem>>, %arg5: memref<4x36xbf16, #tpu.memory_space<vmem>>, %arg6: memref<4x1xf32, #tpu.memory_space<vmem>>, %arg7: memref<4x1xf32, #tpu.memory_space<vmem>>, %arg8: memref<1x4x256xf32, #tpu.memory_space<vmem>>, %arg9: memref<4x401xf32, #tpu.memory_space<vmem>>, %arg10: memref<36x256xbf16, #tpu.memory_space<vmem>>) attributes {dimension_semantics = [#tpu.dimension_semantics<parallel>], iteration_bounds = array<i64: 2>, scalar_prefetch = 0 : i64, scratch_operands = 2 : i64, tpu.core_type = #tpu.core_type<tc>, window_params = [{transform_indices = @transform_0, window_bounds = array<i64: 1, 4, 256>}, {pipeline_mode = #tpu.pipeline_mode<synchronous>, transform_indices = @transform_1, window_bounds = array<i64: 4, 36>}, {pipeline_mode = #tpu.pipeline_mode<synchronous>, transform_indices = @transform_2, window_bounds = array<i64: 4, 1>}, {pipeline_mode = #tpu.pipeline_mode<synchronous>, transform_indices = @transform_3, window_bounds = array<i64: 4, 1>}, {pipeline_mode = #tpu.pipeline_mode<synchronous>, transform_indices = @transform_4, window_bounds = array<i64: 4, 36>}, {pipeline_mode = #tpu.pipeline_mode<synchronous>, transform_indices = @transform_5, window_bounds = array<i64: 4, 1>}, {pipeline_mode = #tpu.pipeline_mode<synchronous>, transform_indices = @transform_6, window_bounds = array<i64: 4, 1>}, {transform_indices = @transform_7, window_bounds = array<i64: 1, 4, 256>}]} {
    %0 = tpu.iota {dimensions = array<i32: 1>} : vector<4x256xi32>
    %c16_i32 = arith.constant 16 : i32
    %c0_i32 = arith.constant 0 : i32
    %1 = arith.cmpi eq, %c16_i32, %c0_i32 : i32
    %c1_i32 = arith.constant 1 : i32
    %2 = arith.select %1, %c1_i32, %c16_i32 : i32
    %3 = vector.broadcast %2 : i32 to vector<4x256xi32>
    %4 = arith.remsi %0, %3 : vector<4x256xi32>
    %c0_i32_0 = arith.constant 0 : i32
    %5 = vector.broadcast %c0_i32_0 : i32 to vector<4x256xi32>
    %6 = arith.cmpi ne, %4, %5 : vector<4x256xi32>
    %c0_i32_1 = arith.constant 0 : i32
    %7 = vector.broadcast %c0_i32_1 : i32 to vector<4x256xi32>
    %8 = arith.cmpi slt, %4, %7 : vector<4x256xi32>
    %c0_i32_2 = arith.constant 0 : i32
    %9 = arith.cmpi slt, %2, %c0_i32_2 : i32
    %10 = vector.broadcast %9 : i1 to vector<4x256xi1>
    %11 = vector.broadcast %10 : vector<4x256xi1> to vector<4x256xi1>
    %12 = arith.xori %8, %11 : vector<4x256xi1>
    %13 = arith.andi %12, %6 : vector<4x256xi1>
    %14 = vector.broadcast %2 : i32 to vector<4x256xi32>
    %15 = arith.addi %4, %14 : vector<4x256xi32>
    %16 = arith.select %13, %15, %4 : vector<4x256xi1>, vector<4x256xi32>
    %c0_i32_3 = arith.constant 0 : i32
    %17 = vector.broadcast %c0_i32_3 : i32 to vector<4x256xi32>
    %18 = arith.cmpi ne, %16, %17 : vector<4x256xi32>
    %c15_i32 = arith.constant 15 : i32
    %19 = vector.broadcast %c15_i32 : i32 to vector<4x256xi32>
    %20 = arith.cmpi ne, %16, %19 : vector<4x256xi32>
    %cst = arith.constant 0.000000e+00 : f32
    %21 = vector.broadcast %cst : f32 to vector<4x401xf32>
    %c0 = arith.constant 0 : index
    %c0_4 = arith.constant 0 : index
    %22 = vector.load %arg9[%c0, %c0_4] : memref<4x401xf32, #tpu.memory_space<vmem>>, vector<4x401xf32>
    tpu.vector_store %arg9[%c0, %c0_4], %21 {strides = array<i32>} : memref<4x401xf32, #tpu.memory_space<vmem>>, vector<4x401xf32>,
    %c0_5 = arith.constant 0 : index
    %c0_6 = arith.constant 0 : index
    %c0_7 = arith.constant 0 : index
    %23 = vector.load %arg1[%c0_5, %c0_6, %c0_7] : memref<1x4x256xf32, #tpu.memory_space<vmem>>, vector<1x4x256xf32>
    %24 = vector.shape_cast %23 : vector<1x4x256xf32> to vector<4x256xf32>
    %c0_8 = arith.constant 0 : index
    %c128 = arith.constant 128 : index
    %25 = vector.load %arg9[%c0_8, %c128] : memref<4x401xf32, #tpu.memory_space<vmem>>, vector<4x256xf32>
    tpu.vector_store %arg9[%c0_8, %c128], %24 {strides = array<i32>} : memref<4x401xf32, #tpu.memory_space<vmem>>, vector<4x256xf32>,
    %c0_9 = arith.constant 0 : index
    %c111 = arith.constant 111 : index
    %26 = vector.load %arg9[%c0_9, %c111] : memref<4x401xf32, #tpu.memory_space<vmem>>, vector<4x256xf32>
    %cst_10 = arith.constant 0.000000e+00 : f32
    %27 = vector.broadcast %cst_10 : f32 to vector<4x256xf32>
    %28 = arith.select %18, %26, %27 : vector<4x256xi1>, vector<4x256xf32>
    %29 = arith.truncf %28 : vector<4x256xf32> to vector<4x256xbf16>
    %c0_11 = arith.constant 0 : index
    %c0_12 = arith.constant 0 : index
    %30 = vector.load %arg10[%c0_11, %c0_12] : memref<36x256xbf16, #tpu.memory_space<vmem>>, vector<4x256xbf16>
    tpu.vector_store %arg10[%c0_11, %c0_12], %29 {strides = array<i32>} : memref<36x256xbf16, #tpu.memory_space<vmem>>, vector<4x256xbf16>,
    %c0_13 = arith.constant 0 : index
    %c112 = arith.constant 112 : index
    %31 = vector.load %arg9[%c0_13, %c112] : memref<4x401xf32, #tpu.memory_space<vmem>>, vector<4x256xf32>
    %32 = arith.truncf %31 : vector<4x256xf32> to vector<4x256xbf16>
    %c4 = arith.constant 4 : index
    %c0_14 = arith.constant 0 : index
    %33 = vector.load %arg10[%c4, %c0_14] : memref<36x256xbf16, #tpu.memory_space<vmem>>, vector<4x256xbf16>
    tpu.vector_store %arg10[%c4, %c0_14], %32 {strides = array<i32>} : memref<36x256xbf16, #tpu.memory_space<vmem>>, vector<4x256xbf16>,
    %c0_15 = arith.constant 0 : index
    %c113 = arith.constant 113 : index
    %34 = vector.load %arg9[%c0_15, %c113] : memref<4x401xf32, #tpu.memory_space<vmem>>, vector<4x256xf32>
    %cst_16 = arith.constant 0.000000e+00 : f32
    %35 = vector.broadcast %cst_16 : f32 to vector<4x256xf32>
    %36 = arith.select %20, %34, %35 : vector<4x256xi1>, vector<4x256xf32>
    %37 = arith.truncf %36 : vector<4x256xf32> to vector<4x256xbf16>
    %c8 = arith.constant 8 : index
    %c0_17 = arith.constant 0 : index
    %38 = vector.load %arg10[%c8, %c0_17] : memref<36x256xbf16, #tpu.memory_space<vmem>>, vector<4x256xbf16>
    tpu.vector_store %arg10[%c8, %c0_17], %37 {strides = array<i32>} : memref<36x256xbf16, #tpu.memory_space<vmem>>, vector<4x256xbf16>,
    %c0_18 = arith.constant 0 : index
    %c127 = arith.constant 127 : index
    %39 = vector.load %arg9[%c0_18, %c127] : memref<4x401xf32, #tpu.memory_space<vmem>>, vector<4x256xf32>
    %cst_19 = arith.constant 0.000000e+00 : f32
    %40 = vector.broadcast %cst_19 : f32 to vector<4x256xf32>
    %41 = arith.select %18, %39, %40 : vector<4x256xi1>, vector<4x256xf32>
    %42 = arith.truncf %41 : vector<4x256xf32> to vector<4x256xbf16>
    %c12 = arith.constant 12 : index
    %c0_20 = arith.constant 0 : index
    %43 = vector.load %arg10[%c12, %c0_20] : memref<36x256xbf16, #tpu.memory_space<vmem>>, vector<4x256xbf16>
    tpu.vector_store %arg10[%c12, %c0_20], %42 {strides = array<i32>} : memref<36x256xbf16, #tpu.memory_space<vmem>>, vector<4x256xbf16>,
    %c0_21 = arith.constant 0 : index
    %c128_22 = arith.constant 128 : index
    %44 = vector.load %arg9[%c0_21, %c128_22] : memref<4x401xf32, #tpu.memory_space<vmem>>, vector<4x256xf32>
    %45 = arith.truncf %44 : vector<4x256xf32> to vector<4x256xbf16>
    %c16 = arith.constant 16 : index
    %c0_23 = arith.constant 0 : index
    %46 = vector.load %arg10[%c16, %c0_23] : memref<36x256xbf16, #tpu.memory_space<vmem>>, vector<4x256xbf16>
    tpu.vector_store %arg10[%c16, %c0_23], %45 {strides = array<i32>} : memref<36x256xbf16, #tpu.memory_space<vmem>>, vector<4x256xbf16>,
    %c0_24 = arith.constant 0 : index
    %c129 = arith.constant 129 : index
    %47 = vector.load %arg9[%c0_24, %c129] : memref<4x401xf32, #tpu.memory_space<vmem>>, vector<4x256xf32>
    %cst_25 = arith.constant 0.000000e+00 : f32
    %48 = vector.broadcast %cst_25 : f32 to vector<4x256xf32>
    %49 = arith.select %20, %47, %48 : vector<4x256xi1>, vector<4x256xf32>
    %50 = arith.truncf %49 : vector<4x256xf32> to vector<4x256xbf16>
    %c20 = arith.constant 20 : index
    %c0_26 = arith.constant 0 : index
    %51 = vector.load %arg10[%c20, %c0_26] : memref<36x256xbf16, #tpu.memory_space<vmem>>, vector<4x256xbf16>
    tpu.vector_store %arg10[%c20, %c0_26], %50 {strides = array<i32>} : memref<36x256xbf16, #tpu.memory_space<vmem>>, vector<4x256xbf16>,
    %c0_27 = arith.constant 0 : index
    %c143 = arith.constant 143 : index
    %52 = vector.load %arg9[%c0_27, %c143] : memref<4x401xf32, #tpu.memory_space<vmem>>, vector<4x256xf32>
    %cst_28 = arith.constant 0.000000e+00 : f32
    %53 = vector.broadcast %cst_28 : f32 to vector<4x256xf32>
    %54 = arith.select %18, %52, %53 : vector<4x256xi1>, vector<4x256xf32>
    %55 = arith.truncf %54 : vector<4x256xf32> to vector<4x256xbf16>
    %c24 = arith.constant 24 : index
    %c0_29 = arith.constant 0 : index
    %56 = vector.load %arg10[%c24, %c0_29] : memref<36x256xbf16, #tpu.memory_space<vmem>>, vector<4x256xbf16>
    tpu.vector_store %arg10[%c24, %c0_29], %55 {strides = array<i32>} : memref<36x256xbf16, #tpu.memory_space<vmem>>, vector<4x256xbf16>,
    %c0_30 = arith.constant 0 : index
    %c144 = arith.constant 144 : index
    %57 = vector.load %arg9[%c0_30, %c144] : memref<4x401xf32, #tpu.memory_space<vmem>>, vector<4x256xf32>
    %58 = arith.truncf %57 : vector<4x256xf32> to vector<4x256xbf16>
    %c28 = arith.constant 28 : index
    %c0_31 = arith.constant 0 : index
    %59 = vector.load %arg10[%c28, %c0_31] : memref<36x256xbf16, #tpu.memory_space<vmem>>, vector<4x256xbf16>
    tpu.vector_store %arg10[%c28, %c0_31], %58 {strides = array<i32>} : memref<36x256xbf16, #tpu.memory_space<vmem>>, vector<4x256xbf16>,
    %c0_32 = arith.constant 0 : index
    %c145 = arith.constant 145 : index
    %60 = vector.load %arg9[%c0_32, %c145] : memref<4x401xf32, #tpu.memory_space<vmem>>, vector<4x256xf32>
    %cst_33 = arith.constant 0.000000e+00 : f32
    %61 = vector.broadcast %cst_33 : f32 to vector<4x256xf32>
    %62 = arith.select %20, %60, %61 : vector<4x256xi1>, vector<4x256xf32>
    %63 = arith.truncf %62 : vector<4x256xf32> to vector<4x256xbf16>
    %c32 = arith.constant 32 : index
    %c0_34 = arith.constant 0 : index
    %64 = vector.load %arg10[%c32, %c0_34] : memref<36x256xbf16, #tpu.memory_space<vmem>>, vector<4x256xbf16>
    tpu.vector_store %arg10[%c32, %c0_34], %63 {strides = array<i32>} : memref<36x256xbf16, #tpu.memory_space<vmem>>, vector<4x256xbf16>,
    %c0_35 = arith.constant 0 : index
    %c0_36 = arith.constant 0 : index
    %65 = vector.load %arg2[%c0_35, %c0_36] : memref<4x36xbf16, #tpu.memory_space<vmem>>, vector<4x36xbf16>
    %c0_37 = arith.constant 0 : index
    %c0_38 = arith.constant 0 : index
    %66 = vector.load %arg10[%c0_37, %c0_38] : memref<36x256xbf16, #tpu.memory_space<vmem>>, vector<36x256xbf16>
    %cst_39 = arith.constant dense<0.000000e+00> : vector<4x256xf32>
    %67 = tpu.matmul %65, %66, %cst_39 {dimension_numbers = #tpu.dot_dimension_numbers<[1], [0], [0], [1], [0, 0, 1, 1], [], []>} : vector<4x36xbf16>, vector<36x256xbf16>, vector<4x256xf32> -> vector<4x256xf32>
    %c0_40 = arith.constant 0 : index
    %c0_41 = arith.constant 0 : index
    %68 = vector.load %arg3[%c0_40, %c0_41] : memref<4x1xf32, #tpu.memory_space<vmem>>, vector<4x1xf32>
    %69 = vector.broadcast %68 : vector<4x1xf32> to vector<4x256xf32>
    %70 = arith.mulf %67, %69 : vector<4x256xf32>
    %c0_42 = arith.constant 0 : index
    %c0_43 = arith.constant 0 : index
    %71 = vector.load %arg4[%c0_42, %c0_43] : memref<4x1xf32, #tpu.memory_space<vmem>>, vector<4x1xf32>
    %72 = vector.broadcast %71 : vector<4x1xf32> to vector<4x256xf32>
    %73 = arith.addf %70, %72 : vector<4x256xf32>
    %cst_44 = arith.constant 0.000000e+00 : f32
    %74 = vector.broadcast %cst_44 : f32 to vector<4x256xf32>
    %75 = arith.maximumf %73, %74 : vector<4x256xf32>
    %c0_45 = arith.constant 0 : index
    %c128_46 = arith.constant 128 : index
    %76 = vector.load %arg9[%c0_45, %c128_46] : memref<4x401xf32, #tpu.memory_space<vmem>>, vector<4x256xf32>
    tpu.vector_store %arg9[%c0_45, %c128_46], %75 {strides = array<i32>} : memref<4x401xf32, #tpu.memory_space<vmem>>, vector<4x256xf32>,
    %c0_47 = arith.constant 0 : index
    %c111_48 = arith.constant 111 : index
    %77 = vector.load %arg9[%c0_47, %c111_48] : memref<4x401xf32, #tpu.memory_space<vmem>>, vector<4x256xf32>
    %cst_49 = arith.constant 0.000000e+00 : f32
    %78 = vector.broadcast %cst_49 : f32 to vector<4x256xf32>
    %79 = arith.select %18, %77, %78 : vector<4x256xi1>, vector<4x256xf32>
    %80 = arith.truncf %79 : vector<4x256xf32> to vector<4x256xbf16>
    %c0_50 = arith.constant 0 : index
    %c0_51 = arith.constant 0 : index
    %81 = vector.load %arg10[%c0_50, %c0_51] : memref<36x256xbf16, #tpu.memory_space<vmem>>, vector<4x256xbf16>
    tpu.vector_store %arg10[%c0_50, %c0_51], %80 {strides = array<i32>} : memref<36x256xbf16, #tpu.memory_space<vmem>>, vector<4x256xbf16>,
    %c0_52 = arith.constant 0 : index
    %c112_53 = arith.constant 112 : index
    %82 = vector.load %arg9[%c0_52, %c112_53] : memref<4x401xf32, #tpu.memory_space<vmem>>, vector<4x256xf32>
    %83 = arith.truncf %82 : vector<4x256xf32> to vector<4x256xbf16>
    %c4_54 = arith.constant 4 : index
    %c0_55 = arith.constant 0 : index
    %84 = vector.load %arg10[%c4_54, %c0_55] : memref<36x256xbf16, #tpu.memory_space<vmem>>, vector<4x256xbf16>
    tpu.vector_store %arg10[%c4_54, %c0_55], %83 {strides = array<i32>} : memref<36x256xbf16, #tpu.memory_space<vmem>>, vector<4x256xbf16>,
    %c0_56 = arith.constant 0 : index
    %c113_57 = arith.constant 113 : index
    %85 = vector.load %arg9[%c0_56, %c113_57] : memref<4x401xf32, #tpu.memory_space<vmem>>, vector<4x256xf32>
    %cst_58 = arith.constant 0.000000e+00 : f32
    %86 = vector.broadcast %cst_58 : f32 to vector<4x256xf32>
    %87 = arith.select %20, %85, %86 : vector<4x256xi1>, vector<4x256xf32>
    %88 = arith.truncf %87 : vector<4x256xf32> to vector<4x256xbf16>
    %c8_59 = arith.constant 8 : index
    %c0_60 = arith.constant 0 : index
    %89 = vector.load %arg10[%c8_59, %c0_60] : memref<36x256xbf16, #tpu.memory_space<vmem>>, vector<4x256xbf16>
    tpu.vector_store %arg10[%c8_59, %c0_60], %88 {strides = array<i32>} : memref<36x256xbf16, #tpu.memory_space<vmem>>, vector<4x256xbf16>,
    %c0_61 = arith.constant 0 : index
    %c127_62 = arith.constant 127 : index
    %90 = vector.load %arg9[%c0_61, %c127_62] : memref<4x401xf32, #tpu.memory_space<vmem>>, vector<4x256xf32>
    %cst_63 = arith.constant 0.000000e+00 : f32
    %91 = vector.broadcast %cst_63 : f32 to vector<4x256xf32>
    %92 = arith.select %18, %90, %91 : vector<4x256xi1>, vector<4x256xf32>
    %93 = arith.truncf %92 : vector<4x256xf32> to vector<4x256xbf16>
    %c12_64 = arith.constant 12 : index
    %c0_65 = arith.constant 0 : index
    %94 = vector.load %arg10[%c12_64, %c0_65] : memref<36x256xbf16, #tpu.memory_space<vmem>>, vector<4x256xbf16>
    tpu.vector_store %arg10[%c12_64, %c0_65], %93 {strides = array<i32>} : memref<36x256xbf16, #tpu.memory_space<vmem>>, vector<4x256xbf16>,
    %c0_66 = arith.constant 0 : index
    %c128_67 = arith.constant 128 : index
    %95 = vector.load %arg9[%c0_66, %c128_67] : memref<4x401xf32, #tpu.memory_space<vmem>>, vector<4x256xf32>
    %96 = arith.truncf %95 : vector<4x256xf32> to vector<4x256xbf16>
    %c16_68 = arith.constant 16 : index
    %c0_69 = arith.constant 0 : index
    %97 = vector.load %arg10[%c16_68, %c0_69] : memref<36x256xbf16, #tpu.memory_space<vmem>>, vector<4x256xbf16>
    tpu.vector_store %arg10[%c16_68, %c0_69], %96 {strides = array<i32>} : memref<36x256xbf16, #tpu.memory_space<vmem>>, vector<4x256xbf16>,
    %c0_70 = arith.constant 0 : index
    %c129_71 = arith.constant 129 : index
    %98 = vector.load %arg9[%c0_70, %c129_71] : memref<4x401xf32, #tpu.memory_space<vmem>>, vector<4x256xf32>
    %cst_72 = arith.constant 0.000000e+00 : f32
    %99 = vector.broadcast %cst_72 : f32 to vector<4x256xf32>
    %100 = arith.select %20, %98, %99 : vector<4x256xi1>, vector<4x256xf32>
    %101 = arith.truncf %100 : vector<4x256xf32> to vector<4x256xbf16>
    %c20_73 = arith.constant 20 : index
    %c0_74 = arith.constant 0 : index
    %102 = vector.load %arg10[%c20_73, %c0_74] : memref<36x256xbf16, #tpu.memory_space<vmem>>, vector<4x256xbf16>
    tpu.vector_store %arg10[%c20_73, %c0_74], %101 {strides = array<i32>} : memref<36x256xbf16, #tpu.memory_space<vmem>>, vector<4x256xbf16>,
    %c0_75 = arith.constant 0 : index
    %c143_76 = arith.constant 143 : index
    %103 = vector.load %arg9[%c0_75, %c143_76] : memref<4x401xf32, #tpu.memory_space<vmem>>, vector<4x256xf32>
    %cst_77 = arith.constant 0.000000e+00 : f32
    %104 = vector.broadcast %cst_77 : f32 to vector<4x256xf32>
    %105 = arith.select %18, %103, %104 : vector<4x256xi1>, vector<4x256xf32>
    %106 = arith.truncf %105 : vector<4x256xf32> to vector<4x256xbf16>
    %c24_78 = arith.constant 24 : index
    %c0_79 = arith.constant 0 : index
    %107 = vector.load %arg10[%c24_78, %c0_79] : memref<36x256xbf16, #tpu.memory_space<vmem>>, vector<4x256xbf16>
    tpu.vector_store %arg10[%c24_78, %c0_79], %106 {strides = array<i32>} : memref<36x256xbf16, #tpu.memory_space<vmem>>, vector<4x256xbf16>,
    %c0_80 = arith.constant 0 : index
    %c144_81 = arith.constant 144 : index
    %108 = vector.load %arg9[%c0_80, %c144_81] : memref<4x401xf32, #tpu.memory_space<vmem>>, vector<4x256xf32>
    %109 = arith.truncf %108 : vector<4x256xf32> to vector<4x256xbf16>
    %c28_82 = arith.constant 28 : index
    %c0_83 = arith.constant 0 : index
    %110 = vector.load %arg10[%c28_82, %c0_83] : memref<36x256xbf16, #tpu.memory_space<vmem>>, vector<4x256xbf16>
    tpu.vector_store %arg10[%c28_82, %c0_83], %109 {strides = array<i32>} : memref<36x256xbf16, #tpu.memory_space<vmem>>, vector<4x256xbf16>,
    %c0_84 = arith.constant 0 : index
    %c145_85 = arith.constant 145 : index
    %111 = vector.load %arg9[%c0_84, %c145_85] : memref<4x401xf32, #tpu.memory_space<vmem>>, vector<4x256xf32>
    %cst_86 = arith.constant 0.000000e+00 : f32
    %112 = vector.broadcast %cst_86 : f32 to vector<4x256xf32>
    %113 = arith.select %20, %111, %112 : vector<4x256xi1>, vector<4x256xf32>
    %114 = arith.truncf %113 : vector<4x256xf32> to vector<4x256xbf16>
    %c32_87 = arith.constant 32 : index
    %c0_88 = arith.constant 0 : index
    %115 = vector.load %arg10[%c32_87, %c0_88] : memref<36x256xbf16, #tpu.memory_space<vmem>>, vector<4x256xbf16>
    tpu.vector_store %arg10[%c32_87, %c0_88], %114 {strides = array<i32>} : memref<36x256xbf16, #tpu.memory_space<vmem>>, vector<4x256xbf16>,
    %c0_89 = arith.constant 0 : index
    %c0_90 = arith.constant 0 : index
    %116 = vector.load %arg5[%c0_89, %c0_90] : memref<4x36xbf16, #tpu.memory_space<vmem>>, vector<4x36xbf16>
    %c0_91 = arith.constant 0 : index
    %c0_92 = arith.constant 0 : index
    %117 = vector.load %arg10[%c0_91, %c0_92] : memref<36x256xbf16, #tpu.memory_space<vmem>>, vector<36x256xbf16>
    %cst_93 = arith.constant dense<0.000000e+00> : vector<4x256xf32>
    %118 = tpu.matmul %116, %117, %cst_93 {dimension_numbers = #tpu.dot_dimension_numbers<[1], [0], [0], [1], [0, 0, 1, 1], [], []>} : vector<4x36xbf16>, vector<36x256xbf16>, vector<4x256xf32> -> vector<4x256xf32>
    %c0_94 = arith.constant 0 : index
    %c0_95 = arith.constant 0 : index
    %119 = vector.load %arg6[%c0_94, %c0_95] : memref<4x1xf32, #tpu.memory_space<vmem>>, vector<4x1xf32>
    %120 = vector.broadcast %119 : vector<4x1xf32> to vector<4x256xf32>
    %121 = arith.mulf %118, %120 : vector<4x256xf32>
    %c0_96 = arith.constant 0 : index
    %c0_97 = arith.constant 0 : index
    %122 = vector.load %arg7[%c0_96, %c0_97] : memref<4x1xf32, #tpu.memory_space<vmem>>, vector<4x1xf32>
    %123 = vector.broadcast %122 : vector<4x1xf32> to vector<4x256xf32>
    %124 = arith.addf %121, %123 : vector<4x256xf32>
    %125 = arith.addf %124, %24 : vector<4x256xf32>
    %cst_98 = arith.constant 0.000000e+00 : f32
    %126 = vector.broadcast %cst_98 : f32 to vector<4x256xf32>
    %127 = arith.maximumf %125, %126 : vector<4x256xf32>
    %128 = vector.shape_cast %127 : vector<4x256xf32> to vector<1x4x256xf32>
    %c0_99 = arith.constant 0 : index
    %c0_100 = arith.constant 0 : index
    %c0_101 = arith.constant 0 : index
    %129 = vector.load %arg8[%c0_99, %c0_100, %c0_101] : memref<1x4x256xf32, #tpu.memory_space<vmem>>, vector<1x4x256xf32>
    tpu.vector_store %arg8[%c0_99, %c0_100, %c0_101], %128 {strides = array<i32>} : memref<1x4x256xf32, #tpu.memory_space<vmem>>, vector<1x4x256xf32>,
    return
  }
  func.func @transform_0(%arg0: i32) -> (i32, i32, i32) {
    %c0_i32 = arith.constant 0 : i32
    %c0_i32_0 = arith.constant 0 : i32
    %c0_i32_1 = arith.constant 0 : i32
    return %arg0, %c0_i32, %c0_i32_0 : i32, i32, i32
  }
  func.func @transform_1(%arg0: i32) -> (i32, i32) {
    %c0_i32 = arith.constant 0 : i32
    %c0_i32_0 = arith.constant 0 : i32
    %c0_i32_1 = arith.constant 0 : i32
    return %c0_i32, %c0_i32_0 : i32, i32
  }
  func.func @transform_2(%arg0: i32) -> (i32, i32) {
    %c0_i32 = arith.constant 0 : i32
    %c0_i32_0 = arith.constant 0 : i32
    %c0_i32_1 = arith.constant 0 : i32
    return %c0_i32, %c0_i32_0 : i32, i32
  }
  func.func @transform_3(%arg0: i32) -> (i32, i32) {
    %c0_i32 = arith.constant 0 : i32
    %c0_i32_0 = arith.constant 0 : i32
    %c0_i32_1 = arith.constant 0 : i32
    return %c0_i32, %c0_i32_0 : i32, i32
  }
  func.func @transform_4(%arg0: i32) -> (i32, i32) {
    %c0_i32 = arith.constant 0 : i32
    %c0_i32_0 = arith.constant 0 : i32
    %c0_i32_1 = arith.constant 0 : i32
    return %c0_i32, %c0_i32_0 : i32, i32
  }
  func.func @transform_5(%arg0: i32) -> (i32, i32) {
    %c0_i32 = arith.constant 0 : i32
    %c0_i32_0 = arith.constant 0 : i32
    %c0_i32_1 = arith.constant 0 : i32
    return %c0_i32, %c0_i32_0 : i32, i32
  }
  func.func @transform_6(%arg0: i32) -> (i32, i32) {
    %c0_i32 = arith.constant 0 : i32
    %c0_i32_0 = arith.constant 0 : i32
    %c0_i32_1 = arith.constant 0 : i32
    return %c0_i32, %c0_i32_0 : i32, i32
  }
  func.func @transform_7(%arg0: i32) -> (i32, i32, i32) {
    %c0_i32 = arith.constant 0 : i32
    %c0_i32_0 = arith.constant 0 : i32
    %c0_i32_1 = arith.constant 0 : i32
    return %arg0, %c0_i32, %c0_i32_0 : i32, i32, i32
  }
}

</mosaic_0001>

<llo_original>
// kernel: tpu_custom_call.1
$region0: #{tpu_custom_call.1}
  #allocation0 [shape = 'u32[]', space=smem, size = 0x4, offset = 0x4, fixed_abs, tag = 'smem constant byte address 0x4 - core index']
  #allocation1 [shape = 'u32[144,128]{1,0:T(1,128)}', space=vmem, size = 0x12000, scoped, tag = 'internal scratch']
  #allocation2 [shape = 'f32[4,401]{1,0:T(4,128)}', space=vmem, size = 0x2000, scoped, tag = 'scratch operand']
  #allocation3 [shape = 'bf16[36,256]{1,0:T(8,128)(2,1)}', space=vmem, size = 0x5000, scoped, tag = 'scratch operand']
  %s0 = inlined_call_operand.vmem [shape: f32[2,4,256], index: 0, kind: input, shape index: {}]
  %s1 = inlined_call_operand.vmem [shape: bf16[4,36], index: 1, kind: input, shape index: {}]
  %s2 = inlined_call_operand.vmem [shape: f32[4,1], index: 2, kind: input, shape index: {}]
  %s3 = inlined_call_operand.vmem [shape: f32[4,1], index: 3, kind: input, shape index: {}]
  %s4 = inlined_call_operand.vmem [shape: bf16[4,36], index: 4, kind: input, shape index: {}]
  %s5 = inlined_call_operand.vmem [shape: f32[4,1], index: 5, kind: input, shape index: {}]
  %s6 = inlined_call_operand.vmem [shape: f32[4,1], index: 6, kind: input, shape index: {}]
  %s7 = inlined_call_operand.hbm [shape: f32[2,4,256], index: 7, kind: output, shape index: {}]
  %s8 = sld [smem:[#allocation0]]
  $region61: #{tpu_custom_call.1} parent=0
    _
  %s10 = ssub.s32 1, %s8
  %s11 = scalar_select 0, %s10, %s8
  $region1: #{tpu_custom_call.1} parent=0
    #allocation4 [shape = 'u8[8192]{0}', space=vmem, size = 0x2000, scoped, tag = 'output window, operand 0']
    #allocation5 [shape = 's32[2]{0}', space=sflag, size = 0x8, scoped, tag = 'scoped memory for tpu_custom_call.1']
    %12 = vsyncpa [#allocation5], 0
    %s13 = scalar_lea.sflag [#allocation5], 1
    %14 = vsyncpa %s13, 0
    loop: start=0, step=1, limit=4
    $region2: #{tpu_custom_call.1} parent=1 // loop_pre_header
      _
    $region3: #{tpu_custom_call.1} parent=1 // loop_header
      %s16 = sphi 0, %s20
      %p17 = scmp.ge.s32.totalorder %s16, 4
      %s26 = sphi 0, %s28
      %s29 = sphi 0, %s26
      %s30 = sphi 0, %s29
      %s46 = sphi 0, %s30
      %s50 = sphi 0, %s50
      %s52 = sphi 0, %s50
      %s53 = sphi 0, %s52
      %s67 = sphi 0, %s53
      %s71 = sphi 0, %s71
      %s73 = sphi 0, %s71
      %s74 = sphi 0, %s73
      %s88 = sphi 0, %s74
      %s92 = sphi 0, %s92
      %s94 = sphi 0, %s92
      %s95 = sphi 0, %s94
      %s109 = sphi 0, %s95
      %s113 = sphi 0, %s113
      %s115 = sphi 0, %s113
      %s116 = sphi 0, %s115
      %s130 = sphi 0, %s116
      %s134 = sphi 0, %s134
      %s136 = sphi 0, %s134
      %s137 = sphi 0, %s136
      %s151 = sphi 0, %s137
      %s155 = sphi 0, %s155
      %s157 = sphi 0, %s155
      %s158 = sphi 0, %s157
      %s172 = sphi 0, %s158
      %s178 = sphi 0, %s180
      %s181 = sphi 0, %s178
      %s182 = sphi 0, %s181
      %s198 = sphi 0, %s182
    $region4: #{tpu_custom_call.1} parent=1 // loop_header_branch
      %19 = sbr.rel (%p17) target = $region8
    $region5: #{tpu_custom_call.1} parent=1 // loop_body
      %s21 = ssub.s32 %s16, 1
      %s22 = ssub.s32 %s16, 2
      %s23 = sadd.s32 %s16, 1
      %s24 = ssub.s32 %s16, %s23
      %p25 = scmp.eq.s32.totalorder %s24, 0
      %s27 = sadd.s32 %s26, 1
      %s28 = scalar_select %p25, %s26, %s27
      %p31 = pneg %p25
      %p32 = scmp.eq.s32.totalorder %s16, 1
      %p33 = por %p31, %p32
      %p34 = scmp.ne.s32.totalorder %s26, %s29
      %p35 = scmp.eq.s32.totalorder %s16, 0
      %p36 = por %p34, %p35
      %p37 = scmp.ne.s32.totalorder %s26, %s29
      %p38 = scmp.eq.s32.totalorder %s21, 1
      %p39 = por %p37, %p38
      %p40 = scmp.ne.s32.totalorder %s29, %s30
      %p41 = scmp.eq.s32.totalorder %s21, 0
      %p42 = por %p40, %p41
      %p43 = scmp.ne.s32.totalorder %s29, %s30
      %p44 = scmp.eq.s32.totalorder %s22, 1
      %p45 = por %p43, %p44
      %p47 = scmp.ne.s32.totalorder %s30, %s46
      %p48 = scmp.eq.s32.totalorder %s22, 0
      %p49 = por %p47, %p48
      %s51 = sadd.s32 %s50, 1
      %p54 = scmp.eq.s32.totalorder %s16, 1
      %p55 = scmp.ne.s32.totalorder %s50, %s52
      %p56 = scmp.eq.s32.totalorder %s16, 0
      %p57 = por %p55, %p56
      %p58 = scmp.ne.s32.totalorder %s50, %s52
      %p59 = scmp.eq.s32.totalorder %s21, 1
      %p60 = por %p58, %p59
      %p61 = scmp.ne.s32.totalorder %s52, %s53
      %p62 = scmp.eq.s32.totalorder %s21, 0
      %p63 = por %p61, %p62
      %p64 = scmp.ne.s32.totalorder %s52, %s53
      %p65 = scmp.eq.s32.totalorder %s22, 1
      %p66 = por %p64, %p65
      %p68 = scmp.ne.s32.totalorder %s53, %s67
      %p69 = scmp.eq.s32.totalorder %s22, 0
      %p70 = por %p68, %p69
      %s72 = sadd.s32 %s71, 1
      %p75 = scmp.eq.s32.totalorder %s16, 1
      %p76 = scmp.ne.s32.totalorder %s71, %s73
      %p77 = scmp.eq.s32.totalorder %s16, 0
      %p78 = por %p76, %p77
      %p79 = scmp.ne.s32.totalorder %s71, %s73
      %p80 = scmp.eq.s32.totalorder %s21, 1
      %p81 = por %p79, %p80
      %p82 = scmp.ne.s32.totalorder %s73, %s74
      %p83 = scmp.eq.s32.totalorder %s21, 0
      %p84 = por %p82, %p83
      %p85 = scmp.ne.s32.totalorder %s73, %s74
      %p86 = scmp.eq.s32.totalorder %s22, 1
      %p87 = por %p85, %p86
      %p89 = scmp.ne.s32.totalorder %s74, %s88
      %p90 = scmp.eq.s32.totalorder %s22, 0
      %p91 = por %p89, %p90
      %s93 = sadd.s32 %s92, 1
      %p96 = scmp.eq.s32.totalorder %s16, 1
      %p97 = scmp.ne.s32.totalorder %s92, %s94
      %p98 = scmp.eq.s32.totalorder %s16, 0
      %p99 = por %p97, %p98
      %p100 = scmp.ne.s32.totalorder %s92, %s94
      %p101 = scmp.eq.s32.totalorder %s21, 1
      %p102 = por %p100, %p101
      %p103 = scmp.ne.s32.totalorder %s94, %s95
      %p104 = scmp.eq.s32.totalorder %s21, 0
      %p105 = por %p103, %p104
      %p106 = scmp.ne.s32.totalorder %s94, %s95
      %p107 = scmp.eq.s32.totalorder %s22, 1
      %p108 = por %p106, %p107
      %p110 = scmp.ne.s32.totalorder %s95, %s109
      %p111 = scmp.eq.s32.totalorder %s22, 0
      %p112 = por %p110, %p111
      %s114 = sadd.s32 %s113, 1
      %p117 = scmp.eq.s32.totalorder %s16, 1
      %p118 = scmp.ne.s32.totalorder %s113, %s115
      %p119 = scmp.eq.s32.totalorder %s16, 0
      %p120 = por %p118, %p119
      %p121 = scmp.ne.s32.totalorder %s113, %s115
      %p122 = scmp.eq.s32.totalorder %s21, 1
      %p123 = por %p121, %p122
      %p124 = scmp.ne.s32.totalorder %s115, %s116
      %p125 = scmp.eq.s32.totalorder %s21, 0
      %p126 = por %p124, %p125
      %p127 = scmp.ne.s32.totalorder %s115, %s116
      %p128 = scmp.eq.s32.totalorder %s22, 1
      %p129 = por %p127, %p128
      %p131 = scmp.ne.s32.totalorder %s116, %s130
      %p132 = scmp.eq.s32.totalorder %s22, 0
      %p133 = por %p131, %p132
      %s135 = sadd.s32 %s134, 1
      %p138 = scmp.eq.s32.totalorder %s16, 1
      %p139 = scmp.ne.s32.totalorder %s134, %s136
      %p140 = scmp.eq.s32.totalorder %s16, 0
      %p141 = por %p139, %p140
      %p142 = scmp.ne.s32.totalorder %s134, %s136
      %p143 = scmp.eq.s32.totalorder %s21, 1
      %p144 = por %p142, %p143
      %p145 = scmp.ne.s32.totalorder %s136, %s137
      %p146 = scmp.eq.s32.totalorder %s21, 0
      %p147 = por %p145, %p146
      %p148 = scmp.ne.s32.totalorder %s136, %s137
      %p149 = scmp.eq.s32.totalorder %s22, 1
      %p150 = por %p148, %p149
      %p152 = scmp.ne.s32.totalorder %s137, %s151
      %p153 = scmp.eq.s32.totalorder %s22, 0
      %p154 = por %p152, %p153
      %s156 = sadd.s32 %s155, 1
      %p159 = scmp.eq.s32.totalorder %s16, 1
      %p160 = scmp.ne.s32.totalorder %s155, %s157
      %p161 = scmp.eq.s32.totalorder %s16, 0
      %p162 = por %p160, %p161
      %p163 = scmp.ne.s32.totalorder %s155, %s157
      %p164 = scmp.eq.s32.totalorder %s21, 1
      %p165 = por %p163, %p164
      %p166 = scmp.ne.s32.totalorder %s157, %s158
      %p167 = scmp.eq.s32.totalorder %s21, 0
      %p168 = por %p166, %p167
      %p169 = scmp.ne.s32.totalorder %s157, %s158
      %p170 = scmp.eq.s32.totalorder %s22, 1
      %p171 = por %p169, %p170
      %p173 = scmp.ne.s32.totalorder %s158, %s172
      %p174 = scmp.eq.s32.totalorder %s22, 0
      %p175 = por %p173, %p174
      %s176 = ssub.s32 %s16, %s23
      %p177 = scmp.eq.s32.totalorder %s176, 0
      %s179 = sadd.s32 %s178, 1
      %s180 = scalar_select %p177, %s178, %s179
      %p183 = pneg %p177
      %p184 = scmp.eq.s32.totalorder %s16, 1
      %p185 = por %p183, %p184
      %p186 = scmp.ne.s32.totalorder %s178, %s181
      %p187 = scmp.eq.s32.totalorder %s16, 0
      %p188 = por %p186, %p187
      %p189 = scmp.ne.s32.totalorder %s178, %s181
      %p190 = scmp.eq.s32.totalorder %s21, 1
      %p191 = por %p189, %p190
      %p192 = scmp.ne.s32.totalorder %s181, %s182
      %p193 = scmp.eq.s32.totalorder %s21, 0
      %p194 = por %p192, %p193
      %p195 = scmp.ne.s32.totalorder %s181, %s182
      %p196 = scmp.eq.s32.totalorder %s22, 1
      %p197 = por %p195, %p196
      %p199 = scmp.ne.s32.totalorder %s182, %s198
      %p200 = scmp.eq.s32.totalorder %s22, 0
      %p201 = por %p199, %p200
      %p202 = scmp.le.s32.totalorder 1, %s16
      %p203 = scmp.lt.s32.totalorder %s16, 3
      %p204 = pnand %p202, %p203
      %p205 = pneg %p204
      // Predicated region
      $region9: #{tpu_custom_call.1} parent=5 // pred_check
        _
      $region10: #{tpu_custom_call.1} parent=5 // pred_check_branch
        %207 = sbr.rel (%p204) target = $region12
      $region11: #{tpu_custom_call.1} parent=5 // pred_region
        %s208 = ssub.s32 %s16, 1
        // Predicated region
        $region13: #{tpu_custom_call.1} parent=11 // pred_check
          %p209 = pneg %p63
        $region14: #{tpu_custom_call.1} parent=11 // pred_check_branch
          %211 = sbr.rel (%p209) target = $region16
        $region15: #{tpu_custom_call.1} parent=11 // pred_region
          _
        $region16: #{tpu_custom_call.1} parent=11 // pred_fallthru
          _
        // Predicated region
        $region17: #{tpu_custom_call.1} parent=11 // pred_check
          %p212 = pneg %p84
        $region18: #{tpu_custom_call.1} parent=11 // pred_check_branch
          %214 = sbr.rel (%p212) target = $region20
        $region19: #{tpu_custom_call.1} parent=11 // pred_region
          _
        $region20: #{tpu_custom_call.1} parent=11 // pred_fallthru
          _
        // Predicated region
        $region21: #{tpu_custom_call.1} parent=11 // pred_check
          %p215 = pneg %p105
        $region22: #{tpu_custom_call.1} parent=11 // pred_check_branch
          %217 = sbr.rel (%p215) target = $region24
        $region23: #{tpu_custom_call.1} parent=11 // pred_region
          _
        $region24: #{tpu_custom_call.1} parent=11 // pred_fallthru
          _
        // Predicated region
        $region25: #{tpu_custom_call.1} parent=11 // pred_check
          %p218 = pneg %p126
        $region26: #{tpu_custom_call.1} parent=11 // pred_check_branch
          %220 = sbr.rel (%p218) target = $region28
        $region27: #{tpu_custom_call.1} parent=11 // pred_region
          _
        $region28: #{tpu_custom_call.1} parent=11 // pred_fallthru
          _
        // Predicated region
        $region29: #{tpu_custom_call.1} parent=11 // pred_check
          %p221 = pneg %p147
        $region30: #{tpu_custom_call.1} parent=11 // pred_check_branch
          %223 = sbr.rel (%p221) target = $region32
        $region31: #{tpu_custom_call.1} parent=11 // pred_region
          _
        $region32: #{tpu_custom_call.1} parent=11 // pred_fallthru
          _
        // Predicated region
        $region33: #{tpu_custom_call.1} parent=11 // pred_check
          %p224 = pneg %p168
        $region34: #{tpu_custom_call.1} parent=11 // pred_check_branch
          %226 = sbr.rel (%p224) target = $region36
        $region35: #{tpu_custom_call.1} parent=11 // pred_region
          _
        $region36: #{tpu_custom_call.1} parent=11 // pred_fallthru
          _
      $region12: #{tpu_custom_call.1} parent=5 // pred_fallthru
        _
      %p227 = scmp.lt.s32.totalorder %s16, 2
      // Predicated region
      $region37: #{tpu_custom_call.1} parent=5 // pred_check
        %p228 = pneg %p227
      $region38: #{tpu_custom_call.1} parent=5 // pred_check_branch
        %230 = sbr.rel (%p228) target = $region40
      $region39: #{tpu_custom_call.1} parent=5 // pred_region
        // Predicated region
        $region41: #{tpu_custom_call.1} parent=39 // pred_check
          %p231 = pneg %p36
        $region42: #{tpu_custom_call.1} parent=39 // pred_check_branch
          %233 = sbr.rel (%p231) target = $region44
        $region43: #{tpu_custom_call.1} parent=39 // pred_region
          %p234 = scmp.lt.s32.totalorder %s16, 1
          %s235 = scalar_select %p234, %s16, 1
          %s236 = smul.addr %s235, 2
          %s237 = smul.addr %s236, 4
          %s238 = scalar_lea.vmem %s0, %s237
        $region44: #{tpu_custom_call.1} parent=39 // pred_fallthru
          _
      $region40: #{tpu_custom_call.1} parent=5 // pred_fallthru
        _
      %p239 = scmp.le.s32.totalorder 1, %s16
      %p240 = scmp.lt.s32.totalorder %s16, 3
      %p241 = pnand %p239, %p240
      %p242 = pneg %p241
      // Predicated region
      $region45: #{tpu_custom_call.1} parent=5 // pred_check
        _
      $region46: #{tpu_custom_call.1} parent=5 // pred_check_branch
        %244 = sbr.rel (%p241) target = $region48
      $region47: #{tpu_custom_call.1} parent=5 // pred_region
        %s245 = ssub.s32 %s16, 1
        %p246 = scmp.lt.s32.totalorder %s21, 1
        %s247 = scalar_select %p246, %s21, 1
        %s248 = smul.addr %s247, 2
        %s249 = smul.addr %s248, 4
        %s250 = scalar_lea.vmem %s0, %s249
        %p251 = pneg %p42
        %p252 = pneg %p39
        %p253 = pneg %p63
        %p254 = pneg %p60
        %p255 = pneg %p84
        %p256 = pneg %p81
        %p257 = pneg %p105
        %p258 = pneg %p102
        %p259 = pneg %p126
        %p260 = pneg %p123
        %p261 = pneg %p147
        %p262 = pneg %p144
        %p263 = pneg %p168
        %p264 = pneg %p165
        %p265 = pneg %p194
        %p266 = pneg %p191
        %s267 = sand.u32 %s181, 1
        %s268 = scalar_lea.sflag [#allocation5], %s267
        %s269 = sand.u32 %s181, 1
        %s270 = smul.addr %s269, 8
        %s271 = scalar_lea.vmem [#allocation4], %s270
        %p272 = scmp.lt.s32.totalorder %s21, 1
        %s273 = scalar_select %p272, %s21, 1
        %s274 = smul.addr %s273, 2
        %s275 = smul.addr %s274, 4
        %s276 = scalar_lea.vmem %s0, %s275
        %v278 = vlaneseq
        %v279 = vand.u32 %v278, 127
        %v280 = vadd.s32 %v279, 128
        %vm281 = vcmp.lt.s32.totalorder %v279, 0
        %v282 = vsub.s32 0, %v279
        %v283 = vsel %vm281, %v282, %v279
        %v284 = vshrl.u32 %v283, 4
        %v285 = vand.u32 %v283, 15
        %v286 = vsub.s32 0, %v285
        %v287 = vsel %vm281, %v286, %v285
        %vm288 = vcmp.lt.s32.totalorder %v280, 0
        %v289 = vsub.s32 0, %v280
        %v290 = vsel %vm288, %v289, %v280
        %v291 = vshrl.u32 %v290, 4
        %v292 = vand.u32 %v290, 15
        %v293 = vsub.s32 0, %v292
        %v294 = vsel %vm288, %v293, %v292
        %vm295 = vcmp.ne.s32.totalorder %v287, 0
        %vm296 = vcmp.ne.s32.totalorder %v294, 0
        %vm297 = vcmp.lt.s32.totalorder %v287, 0
        %vm298 = vcmp.lt.s32.totalorder %v294, 0
        %vm299 = vmand %vm297, %vm295
        %vm300 = vmand %vm298, %vm296
        %v301 = vadd.s32 %v287, 16
        %v302 = vadd.s32 %v294, 16
        %v303 = vsel %vm299, %v301, %v287
        %v304 = vsel %vm300, %v302, %v294
        %vm305 = vcmp.ne.s32.totalorder %v303, 0
        %vm306 = vcmp.ne.s32.totalorder %v304, 0
        %vm307 = vcmp.ne.s32.totalorder %v303, 15
        %vm308 = vcmp.ne.s32.totalorder %v304, 15
        %309 = vst [vmem:[#allocation2] sm:$0xff] 0.0
        %vm310 = vcmask 1043456
        %vm311 = vcmask 138244
        %vm312 = vmor %vm311, %vm310
        %313 = vst.msk [vmem:[#allocation2 + $0x8] sm:$0xff] %vm312, 0.0
        %v314 = vld [vmem:[%s276] sm:$0xff]
        %315 = vst [vmem:[#allocation2 + $0x4] sm:$0xff] %v314
        %v316 = vld [vmem:[#allocation2] sm:$0xff]
        %v317 = vld [vmem:[#allocation2 + $0x8] sm:$0xf]
        %v320 = vcombine.high %v316, %v316
        %321 = vrot.lane.b32.xlu0 %v316, 17
        %v322 = vpop.permute.xlu0 %321
        %323 = vrot.lane.b32.xlu0 %v320, 17
        %v324 = vpop.permute.xlu0 %323
        %325 = vrot.lane.b32.xlu0 %v317, 17
        %v326 = vpop.permute.xlu0 %325
        %vm327 = vcmask 138240
        %v328 = vsel %vm327, %v322, %v324
        %v329 = vsel %vm327, %v324, %v326
        %v332 = vsel %vm305, %v328, 0.0
        %v333 = vsel %vm306, %v329, 0.0
        %v334 = vpack.c.bf16 %v332, %v332
        %v335 = vpack.c.bf16 %v333, %v333
        %v338 = vunpack.c.l.b16 %v334
        %v339 = vunpack.c.l.b16 %v335
        %v340 = vpack.c.b16 %v339, %v338
        %342 = vst [vmem:[#allocation3] sm:$0x33] %v340
        %v343 = vld [vmem:[#allocation2] sm:$0xff]
        %v344 = vld [vmem:[#allocation2 + $0x8] sm:$0xf]
        %v346 = vcombine.high %v343, %v343
        %v348 = vpack.c.bf16 %v343, %v343
        %v349 = vpack.c.bf16 %v346, %v346
        %v350 = vpack.c.bf16 %v344, %v344
        %v354 = vunpack.c.l.b16 %v348
        %v355 = vunpack.c.l.b16 %v349
        %v356 = vunpack.c.l.b16 %v350
        %v357 = vpack.c.b16 %v355, %v354
        %v358 = vpack.c.b16 %v356, %v356
        %v359 = vrot.slane %v357, 6
        %v360 = vrot.slane %v358, 6
        %361 = vrot.lane.b32.xlu0 %v359, 16
        %v362 = vpop.permute.xlu0 %361
        %363 = vrot.lane.b32.xlu0 %v360, 16
        %v364 = vpop.permute.xlu0 %363
        %v365 = vrot.slane %v362, 4
        %v366 = vrot.slane %v364, 4
        %vm367 = vcmask 1043456
        %v368 = vsel %vm367, %v365, %v366
        %vm369 = vcmask 130048
        %v370 = vsel %vm369, %v362, %v368
        %372 = vst [vmem:[#allocation3] sm:$0xcc] %v370
        %v373 = vld [vmem:[#allocation2] sm:$0xff]
        %v374 = vld [vmem:[#allocation2 + $0x8] sm:$0xf]
        %v377 = vcombine.high %v373, %v373
        %378 = vrot.lane.b32.xlu0 %v373, 15
        %v379 = vpop.permute.xlu0 %378
        %380 = vrot.lane.b32.xlu0 %v377, 15
        %v381 = vpop.permute.xlu0 %380
        %382 = vrot.lane.b32.xlu0 %v374, 15
        %v383 = vpop.permute.xlu0 %382
        %vm384 = vcmask 121856
        %v385 = vsel %vm384, %v379, %v381
        %v386 = vsel %vm384, %v381, %v383
        %v389 = vsel %vm307, %v385, 0.0
        %v390 = vsel %vm308, %v386, 0.0
        %v391 = vpack.c.bf16 %v389, %v389
        %v392 = vpack.c.bf16 %v390, %v390
        %v395 = vunpack.c.l.b16 %v391
        %v396 = vunpack.c.l.b16 %v392
        %v397 = vpack.c.b16 %v396, %v395
        %399 = vst [vmem:[#allocation3 + $0x8] sm:$0x33] %v397
        %v400 = vld [vmem:[#allocation2] sm:$0xff]
        %v401 = vld [vmem:[#allocation2 + $0x8] sm:$0xf]
        %v404 = vcombine.high %v400, %v400
        %405 = vrot.lane.b32.xlu0 %v400, 1
        %v406 = vpop.permute.xlu0 %405
        %407 = vrot.lane.b32.xlu0 %v404, 1
        %v408 = vpop.permute.xlu0 %407
        %409 = vrot.lane.b32.xlu0 %v401, 1
        %v410 = vpop.permute.xlu0 %409
        %vm411 = vcmask 7168
        %v412 = vsel %vm411, %v406, %v408
        %v413 = vsel %vm411, %v408, %v410
        %v416 = vsel %vm305, %v412, 0.0
        %v417 = vsel %vm306, %v413, 0.0
        %v418 = vpack.c.bf16 %v416, %v416
        %v419 = vpack.c.bf16 %v417, %v417
        %v422 = vunpack.c.l.b16 %v418
        %v423 = vunpack.c.l.b16 %v419
        %v424 = vpack.c.b16 %v423, %v422
        %v425 = vrot.slane %v424, 6
        %427 = vst [vmem:[#allocation3 + $0x8] sm:$0xcc] %v425
        %v428 = vld [vmem:[#allocation2 + $0x4] sm:$0xff]
        %v430 = vcombine.high %v428, %v428
        %v432 = vpack.c.bf16 %v428, %v428
        %v433 = vpack.c.bf16 %v430, %v430
        %v436 = vunpack.c.l.b16 %v432
        %v437 = vunpack.c.l.b16 %v433
        %v438 = vpack.c.b16 %v437, %v436
        %440 = vst [vmem:[#allocation3 + $0x10] sm:$0x33] %v438
        %v441 = vld [vmem:[#allocation2 + $0x4] sm:$0xff]
        %v442 = vld [vmem:[#allocation2 + $0xc] sm:$0xf]
        %v445 = vcombine.high %v441, %v441
        %446 = vrot.lane.b32.xlu0 %v441, 127
        %v447 = vpop.permute.xlu0 %446
        %448 = vrot.lane.b32.xlu0 %v445, 127
        %v449 = vpop.permute.xlu0 %448
        %450 = vrot.lane.b32.xlu0 %v442, 127
        %v451 = vpop.permute.xlu0 %450
        %vm452 = vcmask 1039360
        %v453 = vsel %vm452, %v447, %v449
        %v454 = vsel %vm452, %v449, %v451
        %v457 = vsel %vm307, %v453, 0.0
        %v458 = vsel %vm308, %v454, 0.0
        %v459 = vpack.c.bf16 %v457, %v457
        %v460 = vpack.c.bf16 %v458, %v458
        %v463 = vunpack.c.l.b16 %v459
        %v464 = vunpack.c.l.b16 %v460
        %v465 = vpack.c.b16 %v464, %v463
        %v466 = vrot.slane %v465, 6
        %468 = vst [vmem:[#allocation3 + $0x10] sm:$0xcc] %v466
        %v469 = vld [vmem:[#allocation2 + $0x4] sm:$0xff]
        %v470 = vld [vmem:[#allocation2 + $0xc] sm:$0xf]
        %v473 = vcombine.high %v469, %v469
        %474 = vrot.lane.b32.xlu0 %v469, 113
        %v475 = vpop.permute.xlu0 %474
        %476 = vrot.lane.b32.xlu0 %v473, 113
        %v477 = vpop.permute.xlu0 %476
        %478 = vrot.lane.b32.xlu0 %v470, 113
        %v479 = vpop.permute.xlu0 %478
        %vm480 = vcmask 924672
        %v481 = vsel %vm480, %v475, %v477
        %v482 = vsel %vm480, %v477, %v479
        %v485 = vsel %vm305, %v481, 0.0
        %v486 = vsel %vm306, %v482, 0.0
        %v487 = vpack.c.bf16 %v485, %v485
        %v488 = vpack.c.bf16 %v486, %v486
        %v491 = vunpack.c.l.b16 %v487
        %v492 = vunpack.c.l.b16 %v488
        %v493 = vpack.c.b16 %v492, %v491
        %495 = vst [vmem:[#allocation3 + $0x18] sm:$0x33] %v493
        %v496 = vld [vmem:[#allocation2 + $0x4] sm:$0xff]
        %v497 = vld [vmem:[#allocation2 + $0xc] sm:$0xf]
        %v499 = vcombine.high %v496, %v496
        %v501 = vpack.c.bf16 %v496, %v496
        %v502 = vpack.c.bf16 %v499, %v499
        %v503 = vpack.c.bf16 %v497, %v497
        %v507 = vunpack.c.l.b16 %v501
        %v508 = vunpack.c.l.b16 %v502
        %v509 = vunpack.c.l.b16 %v503
        %v510 = vpack.c.b16 %v508, %v507
        %v511 = vpack.c.b16 %v509, %v509
        %v512 = vrot.slane %v510, 6
        %v513 = vrot.slane %v511, 6
        %514 = vrot.lane.b32.xlu0 %v512, 112
        %v515 = vpop.permute.xlu0 %514
        %516 = vrot.lane.b32.xlu0 %v513, 112
        %v517 = vpop.permute.xlu0 %516
        %v518 = vrot.slane %v515, 4
        %v519 = vrot.slane %v517, 4
        %v520 = vsel %vm367, %v518, %v519
        %vm521 = vcmask 916480
        %v522 = vsel %vm521, %v515, %v520
        %524 = vst [vmem:[#allocation3 + $0x18] sm:$0xcc] %v522
        %v525 = vld [vmem:[#allocation2 + $0x4] sm:$0xff]
        %v526 = vld [vmem:[#allocation2 + $0xc] sm:$0xf]
        %v529 = vcombine.high %v525, %v525
        %530 = vrot.lane.b32.xlu0 %v525, 111
        %v531 = vpop.permute.xlu0 %530
        %532 = vrot.lane.b32.xlu0 %v529, 111
        %v533 = vpop.permute.xlu0 %532
        %534 = vrot.lane.b32.xlu0 %v526, 111
        %v535 = vpop.permute.xlu0 %534
        %vm536 = vcmask 908288
        %v537 = vsel %vm536, %v531, %v533
        %v538 = vsel %vm536, %v533, %v535
        %v541 = vsel %vm307, %v537, 0.0
        %v542 = vsel %vm308, %v538, 0.0
        %v543 = vpack.c.bf16 %v541, %v541
        %v544 = vpack.c.bf16 %v542, %v542
        %v547 = vunpack.c.l.b16 %v543
        %v548 = vunpack.c.l.b16 %v544
        %v549 = vpack.c.b16 %v548, %v547
        %551 = vst [vmem:[#allocation3 + $0x20] sm:$0x33] %v549
        %v552 = vld [vmem:[%s1] sm:$0x3]
        %v553 = vld [vmem:[#allocation3] sm:$0xff]
        %v554 = vld [vmem:[#allocation3 + $0x8] sm:$0xff]
        %v555 = vld [vmem:[#allocation3 + $0x10] sm:$0xff]
        %v556 = vld [vmem:[#allocation3 + $0x18] sm:$0xff]
        %v557 = vld [vmem:[#allocation3 + $0x20] sm:$0x33]
        %v563 = vunpack.c.l.b16 %v553
        %v564 = vunpack.c.h.b16 %v553
        %v565 = vunpack.c.l.b16 %v554
        %v566 = vunpack.c.h.b16 %v554
        %v567 = vunpack.c.l.b16 %v555
        %v568 = vunpack.c.h.b16 %v555
        %v569 = vunpack.c.l.b16 %v556
        %v570 = vunpack.c.h.b16 %v556
        %v571 = vunpack.c.l.b16 %v557
        %v572 = vunpack.c.h.b16 %v557
        %v573 = vpack.c.b16 %v565, %v563
        %v574 = vpack.c.b16 %v566, %v564
        %v575 = vpack.c.b16 %v569, %v567
        %v576 = vpack.c.b16 %v570, %v568
        %v577 = vpack.c.b16 %v571, %v571
        %v578 = vpack.c.b16 %v572, %v572
        %vm583 = vcmask 293888
        %v585 = vsel %vm583, %v552, 0
        %vm587 = vcmask 1041408
        %v589 = vsel %vm587, %v577, 0
        %v592 = vsel %vm587, %v578, 0
        %594 = vmatprep.subr.bf16.mxu0 0
        %595 = vmatpush1.bf16.msra.mxu0 0
        %596 = vmatprep.subr.bf16.mxu0 0
        %597 = vmatpush1.bf16.msra.mxu0 0
        %598 = vmatprep.subr.bf16.mxu0 0
        %599 = vmatpush1.bf16.msra.mxu0 0
        %600 = vmatprep.subr.bf16.mxu0 0
        %601 = vmatpush1.bf16.msra.mxu0 0
        %602 = vmatprep.subr.bf16.mxu0 0
        %603 = vmatpush1.bf16.msra.mxu0 0
        %604 = vmatprep.subr.bf16.mxu0 %v592
        %605 = vmatpush1.bf16.msra.mxu0 %v589
        %606 = vmatprep.subr.bf16.mxu0 %v576
        %607 = vmatpush1.bf16.msra.mxu0 %v575
        %608 = vmatprep.subr.bf16.mxu0 %v574
        %609 = vmatpush1.bf16.msra.mxu0 %v573
        %610 = vmatprep.subr.bf16.mxu0 0
        %611 = vmatpush2.bf16.msra.mxu0 0
        %612 = vmatprep.subr.bf16.mxu0 0
        %613 = vmatpush2.bf16.msra.mxu0 0
        %614 = vmatprep.subr.bf16.mxu0 0
        %615 = vmatpush2.bf16.msra.mxu0 0
        %616 = vmatprep.subr.bf16.mxu0 0
        %617 = vmatpush2.bf16.msra.mxu0 0
        %618 = vmatprep.subr.bf16.mxu0 0
        %619 = vmatpush2.bf16.msra.mxu0 0
        %620 = vmatprep.subr.bf16.mxu0 0
        %621 = vmatpush2.bf16.msra.mxu0 0
        %622 = vmatprep.subr.bf16.mxu0 0
        %623 = vmatpush2.bf16.msra.mxu0 0
        %624 = vmatprep.subr.bf16.mxu0 0
        %625 = vmatpush2.bf16.msra.mxu0 0
        %626 = vmatprep.mubr.bf16.mxu0 0
        %627 = vmatmul.mubr.bf16.gmra.mxu0 %v585
        %v628 = vpop.f32.mrf.mxu0
        %v629 = vadd.f32 0.0, %v628
        %v630 = vpop.f32.mrf.mxu0
        %v631 = vadd.f32 0.0, %v630
        %v632 = vpop.f32.mrf.mxu0
        %v633 = vpop.f32.mrf.mxu0
        %634 = vdwg.mxu0
        %v635 = vld [vmem:[%s2] sm:$0xf]
        %637 = vset.pattern.permute.xlu0 0
        %638 = vperm.xlu0 %637, %v635
        %v639 = vpop.permute.xlu0 %638
        %v641 = vmul.f32 %v629, %v639
        %v642 = vmul.f32 %v631, %v639
        %v643 = vld [vmem:[%s3] sm:$0xf]
        %645 = vset.pattern.permute.xlu0 0
        %646 = vperm.xlu0 %645, %v643
        %v647 = vpop.permute.xlu0 %646
        %v649 = vadd.f32 %v641, %v647
        %v650 = vadd.f32 %v642, %v647
        %v651 = vmax.f32 %v649, 0.0
        %v652 = vmax.f32 %v650, 0.0
        %v655 = vcombine.low %v651, %v652
        %657 = vst [vmem:[#allocation2 + $0x4] sm:$0xff] %v655
        %v658 = vld [vmem:[#allocation2] sm:$0xff]
        %v659 = vld [vmem:[#allocation2 + $0x8] sm:$0xf]
        %v662 = vcombine.high %v658, %v658
        %663 = vrot.lane.b32.xlu0 %v658, 17
        %v664 = vpop.permute.xlu0 %663
        %665 = vrot.lane.b32.xlu0 %v662, 17
        %v666 = vpop.permute.xlu0 %665
        %667 = vrot.lane.b32.xlu0 %v659, 17
        %v668 = vpop.permute.xlu0 %667
        %v669 = vsel %vm327, %v664, %v666
        %v670 = vsel %vm327, %v666, %v668
        %v673 = vsel %vm305, %v669, 0.0
        %v674 = vsel %vm306, %v670, 0.0
        %v675 = vpack.c.bf16 %v673, %v673
        %v676 = vpack.c.bf16 %v674, %v674
        %v679 = vunpack.c.l.b16 %v675
        %v680 = vunpack.c.l.b16 %v676
        %v681 = vpack.c.b16 %v680, %v679
        %683 = vst [vmem:[#allocation3] sm:$0x33] %v681
        %v684 = vld [vmem:[#allocation2] sm:$0xff]
        %v685 = vld [vmem:[#allocation2 + $0x8] sm:$0xf]
        %v687 = vcombine.high %v684, %v684
        %v689 = vpack.c.bf16 %v684, %v684
        %v690 = vpack.c.bf16 %v687, %v687
        %v691 = vpack.c.bf16 %v685, %v685
        %v695 = vunpack.c.l.b16 %v689
        %v696 = vunpack.c.l.b16 %v690
        %v697 = vunpack.c.l.b16 %v691
        %v698 = vpack.c.b16 %v696, %v695
        %v699 = vpack.c.b16 %v697, %v697
        %v700 = vrot.slane %v698, 6
        %v701 = vrot.slane %v699, 6
        %702 = vrot.lane.b32.xlu0 %v700, 16
        %v703 = vpop.permute.xlu0 %702
        %704 = vrot.lane.b32.xlu0 %v701, 16
        %v705 = vpop.permute.xlu0 %704
        %v706 = vrot.slane %v703, 4
        %v707 = vrot.slane %v705, 4
        %v708 = vsel %vm367, %v706, %v707
        %v709 = vsel %vm369, %v703, %v708
        %711 = vst [vmem:[#allocation3] sm:$0xcc] %v709
        %v712 = vld [vmem:[#allocation2] sm:$0xff]
        %v713 = vld [vmem:[#allocation2 + $0x8] sm:$0xf]
        %v716 = vcombine.high %v712, %v712
        %717 = vrot.lane.b32.xlu0 %v712, 15
        %v718 = vpop.permute.xlu0 %717
        %719 = vrot.lane.b32.xlu0 %v716, 15
        %v720 = vpop.permute.xlu0 %719
        %721 = vrot.lane.b32.xlu0 %v713, 15
        %v722 = vpop.permute.xlu0 %721
        %v723 = vsel %vm384, %v718, %v720
        %v724 = vsel %vm384, %v720, %v722
        %v727 = vsel %vm307, %v723, 0.0
        %v728 = vsel %vm308, %v724, 0.0
        %v729 = vpack.c.bf16 %v727, %v727
        %v730 = vpack.c.bf16 %v728, %v728
        %v733 = vunpack.c.l.b16 %v729
        %v734 = vunpack.c.l.b16 %v730
        %v735 = vpack.c.b16 %v734, %v733
        %737 = vst [vmem:[#allocation3 + $0x8] sm:$0x33] %v735
        %v738 = vld [vmem:[#allocation2] sm:$0xff]
        %v739 = vld [vmem:[#allocation2 + $0x8] sm:$0xf]
        %v742 = vcombine.high %v738, %v738
        %743 = vrot.lane.b32.xlu0 %v738, 1
        %v744 = vpop.permute.xlu0 %743
        %745 = vrot.lane.b32.xlu0 %v742, 1
        %v746 = vpop.permute.xlu0 %745
        %747 = vrot.lane.b32.xlu0 %v739, 1
        %v748 = vpop.permute.xlu0 %747
        %v749 = vsel %vm411, %v744, %v746
        %v750 = vsel %vm411, %v746, %v748
        %v753 = vsel %vm305, %v749, 0.0
        %v754 = vsel %vm306, %v750, 0.0
        %v755 = vpack.c.bf16 %v753, %v753
        %v756 = vpack.c.bf16 %v754, %v754
        %v759 = vunpack.c.l.b16 %v755
        %v760 = vunpack.c.l.b16 %v756
        %v761 = vpack.c.b16 %v760, %v759
        %v762 = vrot.slane %v761, 6
        %764 = vst [vmem:[#allocation3 + $0x8] sm:$0xcc] %v762
        %v765 = vld [vmem:[#allocation2 + $0x4] sm:$0xff]
        %v767 = vcombine.high %v765, %v765
        %v769 = vpack.c.bf16 %v765, %v765
        %v770 = vpack.c.bf16 %v767, %v767
        %v773 = vunpack.c.l.b16 %v769
        %v774 = vunpack.c.l.b16 %v770
        %v775 = vpack.c.b16 %v774, %v773
        %777 = vst [vmem:[#allocation3 + $0x10] sm:$0x33] %v775
        %v778 = vld [vmem:[#allocation2 + $0x4] sm:$0xff]
        %v779 = vld [vmem:[#allocation2 + $0xc] sm:$0xf]
        %v782 = vcombine.high %v778, %v778
        %783 = vrot.lane.b32.xlu0 %v778, 127
        %v784 = vpop.permute.xlu0 %783
        %785 = vrot.lane.b32.xlu0 %v782, 127
        %v786 = vpop.permute.xlu0 %785
        %787 = vrot.lane.b32.xlu0 %v779, 127
        %v788 = vpop.permute.xlu0 %787
        %v789 = vsel %vm452, %v784, %v786
        %v790 = vsel %vm452, %v786, %v788
        %v793 = vsel %vm307, %v789, 0.0
        %v794 = vsel %vm308, %v790, 0.0
        %v795 = vpack.c.bf16 %v793, %v793
        %v796 = vpack.c.bf16 %v794, %v794
        %v799 = vunpack.c.l.b16 %v795
        %v800 = vunpack.c.l.b16 %v796
        %v801 = vpack.c.b16 %v800, %v799
        %v802 = vrot.slane %v801, 6
        %804 = vst [vmem:[#allocation3 + $0x10] sm:$0xcc] %v802
        %v805 = vld [vmem:[#allocation2 + $0x4] sm:$0xff]
        %v806 = vld [vmem:[#allocation2 + $0xc] sm:$0xf]
        %v809 = vcombine.high %v805, %v805
        %810 = vrot.lane.b32.xlu0 %v805, 113
        %v811 = vpop.permute.xlu0 %810
        %812 = vrot.lane.b32.xlu0 %v809, 113
        %v813 = vpop.permute.xlu0 %812
        %814 = vrot.lane.b32.xlu0 %v806, 113
        %v815 = vpop.permute.xlu0 %814
        %v816 = vsel %vm480, %v811, %v813
        %v817 = vsel %vm480, %v813, %v815
        %v820 = vsel %vm305, %v816, 0.0
        %v821 = vsel %vm306, %v817, 0.0
        %v822 = vpack.c.bf16 %v820, %v820
        %v823 = vpack.c.bf16 %v821, %v821
        %v826 = vunpack.c.l.b16 %v822
        %v827 = vunpack.c.l.b16 %v823
        %v828 = vpack.c.b16 %v827, %v826
        %830 = vst [vmem:[#allocation3 + $0x18] sm:$0x33] %v828
        %v831 = vld [vmem:[#allocation2 + $0x4] sm:$0xff]
        %v832 = vld [vmem:[#allocation2 + $0xc] sm:$0xf]
        %v834 = vcombine.high %v831, %v831
        %v836 = vpack.c.bf16 %v831, %v831
        %v837 = vpack.c.bf16 %v834, %v834
        %v838 = vpack.c.bf16 %v832, %v832
        %v842 = vunpack.c.l.b16 %v836
        %v843 = vunpack.c.l.b16 %v837
        %v844 = vunpack.c.l.b16 %v838
        %v845 = vpack.c.b16 %v843, %v842
        %v846 = vpack.c.b16 %v844, %v844
        %v847 = vrot.slane %v845, 6
        %v848 = vrot.slane %v846, 6
        %849 = vrot.lane.b32.xlu0 %v847, 112
        %v850 = vpop.permute.xlu0 %849
        %851 = vrot.lane.b32.xlu0 %v848, 112
        %v852 = vpop.permute.xlu0 %851
        %v853 = vrot.slane %v850, 4
        %v854 = vrot.slane %v852, 4
        %v855 = vsel %vm367, %v853, %v854
        %v856 = vsel %vm521, %v850, %v855
        %858 = vst [vmem:[#allocation3 + $0x18] sm:$0xcc] %v856
        %v859 = vld [vmem:[#allocation2 + $0x4] sm:$0xff]
        %v860 = vld [vmem:[#allocation2 + $0xc] sm:$0xf]
        %v863 = vcombine.high %v859, %v859
        %864 = vrot.lane.b32.xlu0 %v859, 111
        %v865 = vpop.permute.xlu0 %864
        %866 = vrot.lane.b32.xlu0 %v863, 111
        %v867 = vpop.permute.xlu0 %866
        %868 = vrot.lane.b32.xlu0 %v860, 111
        %v869 = vpop.permute.xlu0 %868
        %v870 = vsel %vm536, %v865, %v867
        %v871 = vsel %vm536, %v867, %v869
        %v874 = vsel %vm307, %v870, 0.0
        %v875 = vsel %vm308, %v871, 0.0
        %v876 = vpack.c.bf16 %v874, %v874
        %v877 = vpack.c.bf16 %v875, %v875
        %v880 = vunpack.c.l.b16 %v876
        %v881 = vunpack.c.l.b16 %v877
        %v882 = vpack.c.b16 %v881, %v880
        %884 = vst [vmem:[#allocation3 + $0x20] sm:$0x33] %v882
        %v885 = vld [vmem:[%s4] sm:$0x3]
        %v886 = vld [vmem:[#allocation3] sm:$0xff]
        %v887 = vld [vmem:[#allocation3 + $0x8] sm:$0xff]
        %v888 = vld [vmem:[#allocation3 + $0x10] sm:$0xff]
        %v889 = vld [vmem:[#allocation3 + $0x18] sm:$0xff]
        %v890 = vld [vmem:[#allocation3 + $0x20] sm:$0x33]
        %v896 = vunpack.c.l.b16 %v886
        %v897 = vunpack.c.h.b16 %v886
        %v898 = vunpack.c.l.b16 %v887
        %v899 = vunpack.c.h.b16 %v887
        %v900 = vunpack.c.l.b16 %v888
        %v901 = vunpack.c.h.b16 %v888
        %v902 = vunpack.c.l.b16 %v889
        %v903 = vunpack.c.h.b16 %v889
        %v904 = vunpack.c.l.b16 %v890
        %v905 = vunpack.c.h.b16 %v890
        %v906 = vpack.c.b16 %v898, %v896
        %v907 = vpack.c.b16 %v899, %v897
        %v908 = vpack.c.b16 %v902, %v900
        %v909 = vpack.c.b16 %v903, %v901
        %v910 = vpack.c.b16 %v904, %v904
        %v911 = vpack.c.b16 %v905, %v905
        %v917 = vsel %vm583, %v885, 0
        %v920 = vsel %vm587, %v910, 0
        %v923 = vsel %vm587, %v911, 0
        %925 = vmatprep.subr.bf16.mxu0 0
        %926 = vmatpush1.bf16.msra.mxu0 0
        %927 = vmatprep.subr.bf16.mxu0 0
        %928 = vmatpush1.bf16.msra.mxu0 0
        %929 = vmatprep.subr.bf16.mxu0 0
        %930 = vmatpush1.bf16.msra.mxu0 0
        %931 = vmatprep.subr.bf16.mxu0 0
        %932 = vmatpush1.bf16.msra.mxu0 0
        %933 = vmatprep.subr.bf16.mxu0 0
        %934 = vmatpush1.bf16.msra.mxu0 0
        %935 = vmatprep.subr.bf16.mxu0 %v923
        %936 = vmatpush1.bf16.msra.mxu0 %v920
        %937 = vmatprep.subr.bf16.mxu0 %v909
        %938 = vmatpush1.bf16.msra.mxu0 %v908
        %939 = vmatprep.subr.bf16.mxu0 %v907
        %940 = vmatpush1.bf16.msra.mxu0 %v906
        %941 = vmatprep.subr.bf16.mxu0 0
        %942 = vmatpush2.bf16.msra.mxu0 0
        %943 = vmatprep.subr.bf16.mxu0 0
        %944 = vmatpush2.bf16.msra.mxu0 0
        %945 = vmatprep.subr.bf16.mxu0 0
        %946 = vmatpush2.bf16.msra.mxu0 0
        %947 = vmatprep.subr.bf16.mxu0 0
        %948 = vmatpush2.bf16.msra.mxu0 0
        %949 = vmatprep.subr.bf16.mxu0 0
        %950 = vmatpush2.bf16.msra.mxu0 0
        %951 = vmatprep.subr.bf16.mxu0 0
        %952 = vmatpush2.bf16.msra.mxu0 0
        %953 = vmatprep.subr.bf16.mxu0 0
        %954 = vmatpush2.bf16.msra.mxu0 0
        %955 = vmatprep.subr.bf16.mxu0 0
        %956 = vmatpush2.bf16.msra.mxu0 0
        %957 = vmatprep.mubr.bf16.mxu0 0
        %958 = vmatmul.mubr.bf16.gmra.mxu0 %v917
        %v959 = vpop.f32.mrf.mxu0
        %v960 = vadd.f32 0.0, %v959
        %v961 = vpop.f32.mrf.mxu0
        %v962 = vadd.f32 0.0, %v961
        %v963 = vpop.f32.mrf.mxu0
        %v964 = vpop.f32.mrf.mxu0
        %965 = vdwg.mxu0
        %v966 = vld [vmem:[%s5] sm:$0xf]
        %968 = vset.pattern.permute.xlu0 0
        %969 = vperm.xlu0 %968, %v966
        %v970 = vpop.permute.xlu0 %969
        %v972 = vmul.f32 %v960, %v970
        %v973 = vmul.f32 %v962, %v970
        %v974 = vld [vmem:[%s6] sm:$0xf]
        %976 = vset.pattern.permute.xlu0 0
        %977 = vperm.xlu0 %976, %v974
        %v978 = vpop.permute.xlu0 %977
        %v980 = vadd.f32 %v972, %v978
        %v981 = vadd.f32 %v973, %v978
        %v983 = vcombine.high %v314, %v314
        %v985 = vadd.f32 %v980, %v314
        %v986 = vadd.f32 %v981, %v983
        %v987 = vmax.f32 %v985, 0.0
        %v988 = vmax.f32 %v986, 0.0
        %v991 = vcombine.low %v987, %v988
        %993 = vst [vmem:[%s271] sm:$0xff] %v991
        %s994 = sand.u32 %s181, 1
        %s995 = scalar_lea.sflag [#allocation5], %s994
        %s996 = sand.u32 %s181, 1
        %s997 = smul.addr %s996, 8
        %s998 = scalar_lea.vmem [#allocation4], %s997
        // Predicated region
        $region49: #{tpu_custom_call.1} parent=47 // pred_check
          %p999 = pneg %p191
        $region50: #{tpu_custom_call.1} parent=47 // pred_check_branch
          %1001 = sbr.rel (%p999) target = $region52
        $region51: #{tpu_custom_call.1} parent=47 // pred_region
          %s1003 = ssub.s32 128, 128
          %1004 = vsyncadd %s995, %s1003
          %s1005 = smul.addr %s21, 2
          %s1006 = smul.addr %s1005, 64
          %s1007 = scalar_lea.hbm %s7, %s1006
          %s1009 = sshll.u32 %s998, 4
          %s1010 = int_to_ptr.vmem [resolvable:$true] %s1009
          %1012 = dma.vmem_to_hbm [thread:$0]  %s1010, 128, %s1007, %s995
        $region52: #{tpu_custom_call.1} parent=47 // pred_fallthru
          _
      $region48: #{tpu_custom_call.1} parent=5 // pred_fallthru
        _
      %p1013 = scmp.le.s32.totalorder 2, %s16
      // Predicated region
      $region53: #{tpu_custom_call.1} parent=5 // pred_check
        %p1014 = pneg %p1013
      $region54: #{tpu_custom_call.1} parent=5 // pred_check_branch
        %1016 = sbr.rel (%p1014) target = $region56
      $region55: #{tpu_custom_call.1} parent=5 // pred_region
        %s1017 = ssub.s32 %s16, 2
        // Predicated region
        $region57: #{tpu_custom_call.1} parent=55 // pred_check
          %p1018 = pneg %p197
        $region58: #{tpu_custom_call.1} parent=55 // pred_check_branch
          %1020 = sbr.rel (%p1018) target = $region60
        $region59: #{tpu_custom_call.1} parent=55 // pred_region
          %s1021 = sand.u32 %s182, 1
          %s1022 = scalar_lea.sflag [#allocation5], %s1021
          %s1023 = sand.u32 %s182, 1
          %s1024 = smul.addr %s1023, 8
          %s1025 = scalar_lea.vmem [#allocation4], %s1024
          %1026 = dma.done %s1022, 128
        $region60: #{tpu_custom_call.1} parent=55 // pred_fallthru
          _
      $region56: #{tpu_custom_call.1} parent=5 // pred_fallthru
        _
    $region6: #{tpu_custom_call.1} parent=1 // loop_footer
      %s20 = sadd.s32 1, %s16
    $region7: #{tpu_custom_call.1} parent=1 // loop_footer_branch
      %15 = sbr.rel target = $region3
    $region8: #{tpu_custom_call.1} parent=1 // loop_exit
      _
    %1027 = vsyncpa [#allocation5], 1
    %s1028 = scalar_lea.sflag [#allocation5], 1
    %1029 = vsyncpa %s1028, 1

</llo_original>
